<compile_context>
chip_gen: v7x
topology: tpu7x:2x2x1
jax: 0.10.0
libtpu: 0.0.40
codegen_flags: <defaults>
</compile_context>

<pallas_src>
import math

import jax
import jax.numpy as jnp
from jax.experimental import pallas as pl
from jax.experimental.pallas import tpu as pltpu


def _cdiv(a, b):
    return -(-a // b)


def _pe_outer_sum_kernel(x_ref, y_ref, o_ref):
    """One (th, M, cols) tile of the table as a broadcast outer-sum.

    x_ref: (1, M, cols)  x-position encodings for one image row, reshaped to
                         the lane-dense slab layout (same block every step).
    y_ref: (th, 1, cols) y-position encodings for this block's image rows,
                         lane-tiled to `cols`.
    o_ref: (th, M, cols) output tile.

    All transcendentals were done once on (h + w) positions outside the
    kernel; this body is VPU adds + stores only.
    """
    o_ref[...] = x_ref[...] + y_ref[...]


def _sincos_table(n_pos, d_model, temperature):
    """(n_pos, d_model) table: even channels sin(p*div), odd channels cos(p*div).

    Identical construction to the PyTorch buffer (so the final sum is
    bit-exact against the reference).
    """
    pos = jnp.arange(n_pos, dtype=jnp.float32)
    div = jnp.exp(jnp.arange(0, d_model, 2, dtype=jnp.float32)
                  * jnp.float32(-math.log(temperature) / d_model))
    ang = pos[:, None] * div[None, :]                       # (n_pos, d_model//2)
    return jnp.stack([jnp.sin(ang), jnp.cos(ang)], axis=-1).reshape(n_pos, d_model)


def positional_encoding_forward(x, h, w, d_model, temperature=10000):
    """Equivalent of PositionalEncoding.forward(x, h, w).

    x: [B, h*w, d_model] (only its batch size is used, per the PyTorch module)
    returns: [B, h*w, d_model] float32 positional encodings.
    """
    assert x.shape[1] == h * w and x.shape[2] == d_model
    assert d_model % 2 == 0, "d_model must be even (as required by the PyTorch module)"
    batch = x.shape[0]
    hw = h * w

    # --- tiny separable tables (all sin/cos happens here, (h+w)*d_model elems) ---
    x_enc = _sincos_table(w, d_model, temperature)          # (w, d_model)
    y_enc = _sincos_table(h, d_model, temperature)          # (h, d_model)

    # --- lane-dense slab layout -------------------------------------------------
    # Group k image columns per slab row so cols = k*d_model is a multiple of 128
    # (k = lcm(d_model,128)/d_model) whenever k divides w; otherwise fall back to
    # the natural layout (k = 1).  Correctness holds for any k | w because
    # channel index depends only on the lane (cols % d_model == 0) and each slab
    # row stays inside one image row (M * cols == w * d_model).
    k0 = 128 // math.gcd(d_model, 128)
    k = k0 if (w % k0 == 0) else 1
    cols = k * d_model
    M = w // k                                              # slab rows per image row

    # x pattern for one image row, in slab layout (same block every grid step).
    x_pat = x_enc.reshape(1, M, cols)                       # (1, M, cols)
    # y encodings lane-tiled to cols: y_pat[q, 0, c] = y_enc[q, c % d_model].
    y_pat = jnp.tile(y_enc, (1, k)).reshape(h, 1, cols)     # (h, 1, cols)

    # --- tiling over h ------------------------------------------------------------
    row_bytes = w * d_model * 4                             # one image row of output
    th_cap = max(1, (4 << 20) // row_bytes)                 # ~4 MiB output block
    n_steps = _cdiv(h, min(h, th_cap))
    if h >= 2:
        n_steps = max(n_steps, 2)                           # >=2 steps: v7x megacore
    th = _cdiv(h, n_steps)
    grid = (_cdiv(h, th),)                                  # cdiv grid, ragged edge ok

    out3 = pl.pallas_call(
        _pe_outer_sum_kernel,
        out_shape=jax.ShapeDtypeStruct((h, M, cols), jnp.float32),
        grid_spec=pltpu.PrefetchScalarGridSpec(
            num_scalar_prefetch=0,
            grid=grid,
            in_specs=[
                pl.BlockSpec((1, M, cols), lambda i: (0, 0, 0)),   # resident x table
                pl.BlockSpec((th, 1, cols), lambda i: (i, 0, 0)),  # y rows for block
            ],
            out_specs=pl.BlockSpec((th, M, cols), lambda i: (i, 0, 0)),
        ),
        compiler_params=pltpu.CompilerParams(
            dimension_semantics=("parallel",),
        ),
    )(x_pat, y_pat)

    # Layout plumbing outside the kernel: contiguous row-major reshape (free) and
    # the lazy batch broadcast (the PyTorch .expand equivalent).
    pe = out3.reshape(hw, d_model)
    return jnp.broadcast_to(pe[None], (batch, hw, d_model))


def _reference(batch, h, w, d_model, temperature=10000):
    # Pure-JAX reference mirroring the PyTorch buffer construction.
    y_pos = jnp.arange(h, dtype=jnp.float32)[:, None] * jnp.ones((1, w), jnp.float32)
    x_pos = jnp.ones((h, 1), jnp.float32) * jnp.arange(w, dtype=jnp.float32)[None, :]
    div_term = jnp.exp(
        jnp.arange(0, d_model, 2, dtype=jnp.float32) * (-math.log(temperature) / d_model)
    )
    pe = jnp.zeros((h, w, d_model), jnp.float32)
    pe = pe.at[:, :, 0::2].set(jnp.sin(x_pos[..., None] * div_term))
    pe = pe.at[:, :, 1::2].set(jnp.cos(x_pos[..., None] * div_term))
    y_pe = jnp.zeros((h, w, d_model), jnp.float32)
    y_pe = y_pe.at[:, :, 0::2].set(jnp.sin(y_pos[..., None] * div_term))
    y_pe = y_pe.at[:, :, 1::2].set(jnp.cos(y_pos[..., None] * div_term))
    pe = (pe + y_pe).reshape(h * w, d_model)
    return jnp.broadcast_to(pe[None], (batch, h * w, d_model))


if __name__ == "__main__":
    batch, h, w, d_model = 2, 16, 16, 32

    key = jax.random.PRNGKey(0)
    x = jax.random.normal(key, (batch, h * w, d_model), dtype=jnp.float32)

    out = positional_encoding_forward(x, h, w, d_model)
    out = jax.block_until_ready(out)

    ref = _reference(batch, h, w, d_model)
    assert out.shape == (batch, h * w, d_model)
    assert jnp.allclose(out, ref, atol=1e-6, rtol=1e-6)

    print("KERNEL_OK")
</pallas_src>

<mosaic_0001>
module attributes {stable_mosaic.version = 11 : i64} {
  func.func @_pe_outer_sum_kernel(%arg0: i32, %arg1: memref<1x4x128xf32, #tpu.memory_space<vmem>>, %arg2: memref<8x1x128xf32, #tpu.memory_space<vmem>>, %arg3: memref<8x4x128xf32, #tpu.memory_space<vmem>>) attributes {dimension_semantics = [#tpu.dimension_semantics<parallel>], iteration_bounds = array<i64: 2>, scalar_prefetch = 0 : i64, scratch_operands = 0 : i64, tpu.core_type = #tpu.core_type<tc>, window_params = [{pipeline_mode = #tpu.pipeline_mode<synchronous>, transform_indices = @transform_0, window_bounds = array<i64: 1, 4, 128>}, {transform_indices = @transform_1, window_bounds = array<i64: 8, 1, 128>}, {transform_indices = @transform_2, window_bounds = array<i64: 8, 4, 128>}]} {
    %c0 = arith.constant 0 : index
    %c0_0 = arith.constant 0 : index
    %c0_1 = arith.constant 0 : index
    %0 = vector.load %arg1[%c0, %c0_0, %c0_1] : memref<1x4x128xf32, #tpu.memory_space<vmem>>, vector<1x4x128xf32>
    %c0_2 = arith.constant 0 : index
    %c0_3 = arith.constant 0 : index
    %c0_4 = arith.constant 0 : index
    %1 = vector.load %arg2[%c0_2, %c0_3, %c0_4] : memref<8x1x128xf32, #tpu.memory_space<vmem>>, vector<8x1x128xf32>
    %2 = vector.broadcast %0 : vector<1x4x128xf32> to vector<8x4x128xf32>
    %3 = vector.broadcast %1 : vector<8x1x128xf32> to vector<8x4x128xf32>
    %4 = arith.addf %2, %3 : vector<8x4x128xf32>
    %c0_5 = arith.constant 0 : index
    %c0_6 = arith.constant 0 : index
    %c0_7 = arith.constant 0 : index
    %5 = vector.load %arg3[%c0_5, %c0_6, %c0_7] : memref<8x4x128xf32, #tpu.memory_space<vmem>>, vector<8x4x128xf32>
    tpu.vector_store %arg3[%c0_5, %c0_6, %c0_7], %4 {strides = array<i32>} : memref<8x4x128xf32, #tpu.memory_space<vmem>>, vector<8x4x128xf32>,
    return
  }
  func.func @transform_0(%arg0: i32) -> (i32, i32, i32) {
    %c0_i32 = arith.constant 0 : i32
    %c0_i32_0 = arith.constant 0 : i32
    %c0_i32_1 = arith.constant 0 : i32
    %c0_i32_2 = arith.constant 0 : i32
    return %c0_i32, %c0_i32_0, %c0_i32_1 : i32, i32, i32
  }
  func.func @transform_1(%arg0: i32) -> (i32, i32, i32) {
    %c0_i32 = arith.constant 0 : i32
    %c0_i32_0 = arith.constant 0 : i32
    %c0_i32_1 = arith.constant 0 : i32
    return %arg0, %c0_i32, %c0_i32_0 : i32, i32, i32
  }
  func.func @transform_2(%arg0: i32) -> (i32, i32, i32) {
    %c0_i32 = arith.constant 0 : i32
    %c0_i32_0 = arith.constant 0 : i32
    %c0_i32_1 = arith.constant 0 : i32
    return %arg0, %c0_i32, %c0_i32_0 : i32, i32, i32
  }
}

</mosaic_0001>

<llo_original>
// kernel: tpu_custom_call.1
$region0: #{tpu_custom_call.1}
  #allocation0 [shape = 'u32[]', space=smem, size = 0x4, offset = 0x4, fixed_abs, tag = 'smem constant byte address 0x4 - core index']
  #allocation1 [shape = 'u32[144,128]{1,0:T(1,128)}', space=vmem, size = 0x12000, scoped, tag = 'internal scratch']
  %s0 = inlined_call_operand.hbm [shape: f32[1,4,128], index: 0, kind: input, shape index: {}]
  %s1 = inlined_call_operand.hbm [shape: f32[16,1,128], index: 1, kind: input, shape index: {}]
  %s2 = inlined_call_operand.hbm [shape: f32[16,4,128], index: 2, kind: output, shape index: {}]
  %s3 = sld [smem:[#allocation0]]
  $region49: #{tpu_custom_call.1} parent=0
    _
  %s5 = ssub.s32 1, %s3
  %s6 = scalar_select 0, %s5, %s3
  $region1: #{tpu_custom_call.1} parent=0
    #allocation2 [shape = 'u8[2048]{0}', space=vmem, size = 0x800, scoped, tag = 'input window, operand 0, single buffered']
    #allocation3 [shape = 's32[2]{0}', space=sflag, size = 0x8, scoped, tag = 'scoped memory for tpu_custom_call.1']
    #allocation4 [shape = 's32[2]{0}', space=sflag, size = 0x8, scoped, tag = 'scoped memory for tpu_custom_call.1']
    #allocation5 [shape = 'u8[8192]{0}', space=vmem, size = 0x2000, scoped, tag = 'input window, operand 1']
    #allocation6 [shape = 's32[2]{0}', space=sflag, size = 0x8, scoped, tag = 'scoped memory for tpu_custom_call.1']
    #allocation7 [shape = 'u8[32768]{0}', space=vmem, size = 0x8000, scoped, tag = 'output window, operand 0']
    %7 = vsyncpa [#allocation3], 0
    %8 = vsyncpa [#allocation6], 0
    %s9 = scalar_lea.sflag [#allocation6], 1
    %10 = vsyncpa %s9, 0
    %11 = vsyncpa [#allocation4], 0
    %s12 = scalar_lea.sflag [#allocation4], 1
    %13 = vsyncpa %s12, 0
    loop: start=0, step=1, limit=4
    $region2: #{tpu_custom_call.1} parent=1 // loop_pre_header
      _
    $region3: #{tpu_custom_call.1} parent=1 // loop_header
      %s15 = sphi 0, %s19
      %p16 = scmp.ge.s32.totalorder %s15, 4
      %s23 = sphi 0, %s23
      %s25 = sphi 0, %s23
      %s26 = sphi 0, %s25
      %s40 = sphi 0, %s26
      %s46 = sphi 0, %s48
      %s49 = sphi 0, %s46
      %s50 = sphi 0, %s49
      %s66 = sphi 0, %s50
      %s72 = sphi 0, %s74
      %s75 = sphi 0, %s72
      %s76 = sphi 0, %s75
      %s92 = sphi 0, %s76
    $region4: #{tpu_custom_call.1} parent=1 // loop_header_branch
      %18 = sbr.rel (%p16) target = $region8
    $region5: #{tpu_custom_call.1} parent=1 // loop_body
      %s20 = ssub.s32 %s15, 1
      %s21 = ssub.s32 %s15, 2
      %s22 = sadd.s32 %s15, 1
      %s24 = sadd.s32 %s23, 1
      %p27 = scmp.eq.s32.totalorder %s15, 1
      %p28 = scmp.ne.s32.totalorder %s23, %s25
      %p29 = scmp.eq.s32.totalorder %s15, 0
      %p30 = por %p28, %p29
      %p31 = scmp.ne.s32.totalorder %s23, %s25
      %p32 = scmp.eq.s32.totalorder %s20, 1
      %p33 = por %p31, %p32
      %p34 = scmp.ne.s32.totalorder %s25, %s26
      %p35 = scmp.eq.s32.totalorder %s20, 0
      %p36 = por %p34, %p35
      %p37 = scmp.ne.s32.totalorder %s25, %s26
      %p38 = scmp.eq.s32.totalorder %s21, 1
      %p39 = por %p37, %p38
      %p41 = scmp.ne.s32.totalorder %s26, %s40
      %p42 = scmp.eq.s32.totalorder %s21, 0
      %p43 = por %p41, %p42
      %s44 = ssub.s32 %s15, %s22
      %p45 = scmp.eq.s32.totalorder %s44, 0
      %s47 = sadd.s32 %s46, 1
      %s48 = scalar_select %p45, %s46, %s47
      %p51 = pneg %p45
      %p52 = scmp.eq.s32.totalorder %s15, 1
      %p53 = por %p51, %p52
      %p54 = scmp.ne.s32.totalorder %s46, %s49
      %p55 = scmp.eq.s32.totalorder %s15, 0
      %p56 = por %p54, %p55
      %p57 = scmp.ne.s32.totalorder %s46, %s49
      %p58 = scmp.eq.s32.totalorder %s20, 1
      %p59 = por %p57, %p58
      %p60 = scmp.ne.s32.totalorder %s49, %s50
      %p61 = scmp.eq.s32.totalorder %s20, 0
      %p62 = por %p60, %p61
      %p63 = scmp.ne.s32.totalorder %s49, %s50
      %p64 = scmp.eq.s32.totalorder %s21, 1
      %p65 = por %p63, %p64
      %p67 = scmp.ne.s32.totalorder %s50, %s66
      %p68 = scmp.eq.s32.totalorder %s21, 0
      %p69 = por %p67, %p68
      %s70 = ssub.s32 %s15, %s22
      %p71 = scmp.eq.s32.totalorder %s70, 0
      %s73 = sadd.s32 %s72, 1
      %s74 = scalar_select %p71, %s72, %s73
      %p77 = pneg %p71
      %p78 = scmp.eq.s32.totalorder %s15, 1
      %p79 = por %p77, %p78
      %p80 = scmp.ne.s32.totalorder %s72, %s75
      %p81 = scmp.eq.s32.totalorder %s15, 0
      %p82 = por %p80, %p81
      %p83 = scmp.ne.s32.totalorder %s72, %s75
      %p84 = scmp.eq.s32.totalorder %s20, 1
      %p85 = por %p83, %p84
      %p86 = scmp.ne.s32.totalorder %s75, %s76
      %p87 = scmp.eq.s32.totalorder %s20, 0
      %p88 = por %p86, %p87
      %p89 = scmp.ne.s32.totalorder %s75, %s76
      %p90 = scmp.eq.s32.totalorder %s21, 1
      %p91 = por %p89, %p90
      %p93 = scmp.ne.s32.totalorder %s76, %s92
      %p94 = scmp.eq.s32.totalorder %s21, 0
      %p95 = por %p93, %p94
      %p96 = scmp.le.s32.totalorder 1, %s15
      %p97 = scmp.lt.s32.totalorder %s15, 3
      %p98 = pnand %p96, %p97
      %p99 = pneg %p98
      // Predicated region
      $region9: #{tpu_custom_call.1} parent=5 // pred_check
        _
      $region10: #{tpu_custom_call.1} parent=5 // pred_check_branch
        %101 = sbr.rel (%p98) target = $region12
      $region11: #{tpu_custom_call.1} parent=5 // pred_region
        %s102 = ssub.s32 %s15, 1
        // Predicated region
        $region13: #{tpu_custom_call.1} parent=11 // pred_check
          %p103 = pneg %p36
        $region14: #{tpu_custom_call.1} parent=11 // pred_check_branch
          %105 = sbr.rel (%p103) target = $region16
        $region15: #{tpu_custom_call.1} parent=11 // pred_region
          %s107 = ssub.s32 64, 64
          %108 = vsyncadd [#allocation3], %s107
          %s110 = sshll.u32 [#allocation2], 4
          %s111 = int_to_ptr.vmem [resolvable:$true] %s110
          %113 = dma.hbm_to_vmem [thread:$0]  %s0, 64, %s111, [#allocation3]
        $region16: #{tpu_custom_call.1} parent=11 // pred_fallthru
          _
      $region12: #{tpu_custom_call.1} parent=5 // pred_fallthru
        _
      %p114 = scmp.lt.s32.totalorder %s15, 2
      // Predicated region
      $region17: #{tpu_custom_call.1} parent=5 // pred_check
        %p115 = pneg %p114
      $region18: #{tpu_custom_call.1} parent=5 // pred_check_branch
        %117 = sbr.rel (%p115) target = $region20
      $region19: #{tpu_custom_call.1} parent=5 // pred_region
        // Predicated region
        $region21: #{tpu_custom_call.1} parent=19 // pred_check
          %p118 = pneg %p56
        $region22: #{tpu_custom_call.1} parent=19 // pred_check_branch
          %120 = sbr.rel (%p118) target = $region24
        $region23: #{tpu_custom_call.1} parent=19 // pred_region
          %s121 = sand.u32 %s46, 1
          %s122 = scalar_lea.sflag [#allocation6], %s121
          %s123 = sand.u32 %s46, 1
          %s124 = smul.addr %s123, 8
          %s125 = scalar_lea.vmem [#allocation5], %s124
          %s126 = smul.u32 8, %s15
          %s128 = ssub.s32 128, 128
          %129 = vsyncadd %s122, %s128
          %s130 = smul.addr %s126, 16
          %s131 = scalar_lea.hbm %s1, %s130
          %s132 = sshll.u32 %s125, 4
          %s133 = int_to_ptr.vmem [resolvable:$true] %s132
          %138 = dma.hbm_to_vmem [thread:$0]  %s131, 128, %s133, %s122, 16, 16, 1
        $region24: #{tpu_custom_call.1} parent=19 // pred_fallthru
          _
      $region20: #{tpu_custom_call.1} parent=5 // pred_fallthru
        _
      %p139 = scmp.le.s32.totalorder 1, %s15
      %p140 = scmp.lt.s32.totalorder %s15, 3
      %p141 = pnand %p139, %p140
      %p142 = pneg %p141
      // Predicated region
      $region25: #{tpu_custom_call.1} parent=5 // pred_check
        _
      $region26: #{tpu_custom_call.1} parent=5 // pred_check_branch
        %144 = sbr.rel (%p141) target = $region28
      $region27: #{tpu_custom_call.1} parent=5 // pred_region
        %s145 = ssub.s32 %s15, 1
        // Predicated region
        $region29: #{tpu_custom_call.1} parent=27 // pred_check
          %p146 = pneg %p36
        $region30: #{tpu_custom_call.1} parent=27 // pred_check_branch
          %148 = sbr.rel (%p146) target = $region32
        $region31: #{tpu_custom_call.1} parent=27 // pred_region
          %149 = dma.done [#allocation3], 64
        $region32: #{tpu_custom_call.1} parent=27 // pred_fallthru
          _
        %s150 = sand.u32 %s49, 1
        %s151 = scalar_lea.sflag [#allocation6], %s150
        %s152 = sand.u32 %s49, 1
        %s153 = smul.addr %s152, 8
        %s154 = scalar_lea.vmem [#allocation5], %s153
        // Predicated region
        $region33: #{tpu_custom_call.1} parent=27 // pred_check
          %p155 = pneg %p62
        $region34: #{tpu_custom_call.1} parent=27 // pred_check_branch
          %157 = sbr.rel (%p155) target = $region36
        $region35: #{tpu_custom_call.1} parent=27 // pred_region
          %158 = dma.done %s151, 128
        $region36: #{tpu_custom_call.1} parent=27 // pred_fallthru
          _
        %p159 = pneg %p36
        %p160 = pneg %p33
        %s161 = sand.u32 %s49, 1
        %s162 = scalar_lea.sflag [#allocation6], %s161
        %s163 = sand.u32 %s49, 1
        %s164 = smul.addr %s163, 8
        %s165 = scalar_lea.vmem [#allocation5], %s164
        %p166 = pneg %p62
        %p167 = pneg %p59
        %p168 = pneg %p88
        %p169 = pneg %p85
        %s170 = sand.u32 %s75, 1
        %s171 = scalar_lea.sflag [#allocation4], %s170
        %s172 = sand.u32 %s75, 1
        %s173 = smul.addr %s172, 32
        %s174 = scalar_lea.vmem [#allocation7], %s173
        %s175 = smul.u32 8, %s20
        %s176 = smul.u32 8, %s20
        %v177 = vld [vmem:[#allocation2] sm:$0xf]
        %v178 = vld [vmem:[%s154] sm:$0x1]
        %v179 = vld [vmem:[%s154 + $0x1] sm:$0x1]
        %v180 = vld [vmem:[%s154 + $0x2] sm:$0x1]
        %v181 = vld [vmem:[%s154 + $0x3] sm:$0x1]
        %v182 = vld [vmem:[%s154 + $0x4] sm:$0x1]
        %v183 = vld [vmem:[%s154 + $0x5] sm:$0x1]
        %v184 = vld [vmem:[%s154 + $0x6] sm:$0x1]
        %v185 = vld [vmem:[%s154 + $0x7] sm:$0x1]
        %v194 = vlaneseq
        %v195 = vshrl.u32 %v194, 7
        %v196 = vsub.s32 0, %v195
        %v197 = vrot.slane %v178, %v196
        %v198 = vlaneseq
        %v199 = vshrl.u32 %v198, 7
        %v200 = vsub.s32 0, %v199
        %v201 = vrot.slane %v179, %v200
        %v202 = vlaneseq
        %v203 = vshrl.u32 %v202, 7
        %v204 = vsub.s32 0, %v203
        %v205 = vrot.slane %v180, %v204
        %v206 = vlaneseq
        %v207 = vshrl.u32 %v206, 7
        %v208 = vsub.s32 0, %v207
        %v209 = vrot.slane %v181, %v208
        %v210 = vlaneseq
        %v211 = vshrl.u32 %v210, 7
        %v212 = vsub.s32 0, %v211
        %v213 = vrot.slane %v182, %v212
        %v214 = vlaneseq
        %v215 = vshrl.u32 %v214, 7
        %v216 = vsub.s32 0, %v215
        %v217 = vrot.slane %v183, %v216
        %v218 = vlaneseq
        %v219 = vshrl.u32 %v218, 7
        %v220 = vsub.s32 0, %v219
        %v221 = vrot.slane %v184, %v220
        %v222 = vlaneseq
        %v223 = vshrl.u32 %v222, 7
        %v224 = vsub.s32 0, %v223
        %v225 = vrot.slane %v185, %v224
        %v234 = vadd.f32 %v177, %v197
        %v235 = vadd.f32 %v177, %v201
        %v236 = vadd.f32 %v177, %v205
        %v237 = vadd.f32 %v177, %v209
        %v238 = vadd.f32 %v177, %v213
        %v239 = vadd.f32 %v177, %v217
        %v240 = vadd.f32 %v177, %v221
        %v241 = vadd.f32 %v177, %v225
        %242 = vst [vmem:[%s174] sm:$0xf] %v234
        %243 = vst [vmem:[%s174 + $0x4] sm:$0xf] %v235
        %244 = vst [vmem:[%s174 + $0x8] sm:$0xf] %v236
        %245 = vst [vmem:[%s174 + $0xc] sm:$0xf] %v237
        %246 = vst [vmem:[%s174 + $0x10] sm:$0xf] %v238
        %247 = vst [vmem:[%s174 + $0x14] sm:$0xf] %v239
        %248 = vst [vmem:[%s174 + $0x18] sm:$0xf] %v240
        %249 = vst [vmem:[%s174 + $0x1c] sm:$0xf] %v241
        %s250 = sand.u32 %s75, 1
        %s251 = scalar_lea.sflag [#allocation4], %s250
        %s252 = sand.u32 %s75, 1
        %s253 = smul.addr %s252, 32
        %s254 = scalar_lea.vmem [#allocation7], %s253
        // Predicated region
        $region37: #{tpu_custom_call.1} parent=27 // pred_check
          %p255 = pneg %p85
        $region38: #{tpu_custom_call.1} parent=27 // pred_check_branch
          %257 = sbr.rel (%p255) target = $region40
        $region39: #{tpu_custom_call.1} parent=27 // pred_region
          %s258 = smul.u32 8, %s20
          %s260 = ssub.s32 512, 512
          %261 = vsyncadd %s251, %s260
          %s262 = smul.addr %s258, 64
          %s263 = scalar_lea.hbm %s2, %s262
          %s264 = sshll.u32 %s254, 4
          %s265 = int_to_ptr.vmem [resolvable:$true] %s264
          %270 = dma.vmem_to_hbm [thread:$0]  %s265, 512, %s263, %s251, 64, 64, 4
        $region40: #{tpu_custom_call.1} parent=27 // pred_fallthru
          _
      $region28: #{tpu_custom_call.1} parent=5 // pred_fallthru
        _
      %p271 = scmp.le.s32.totalorder 2, %s15
      // Predicated region
      $region41: #{tpu_custom_call.1} parent=5 // pred_check
        %p272 = pneg %p271
      $region42: #{tpu_custom_call.1} parent=5 // pred_check_branch
        %274 = sbr.rel (%p272) target = $region44
      $region43: #{tpu_custom_call.1} parent=5 // pred_region
        %s275 = ssub.s32 %s15, 2
        // Predicated region
        $region45: #{tpu_custom_call.1} parent=43 // pred_check
          %p276 = pneg %p91
        $region46: #{tpu_custom_call.1} parent=43 // pred_check_branch
          %278 = sbr.rel (%p276) target = $region48
        $region47: #{tpu_custom_call.1} parent=43 // pred_region
          %s279 = sand.u32 %s76, 1
          %s280 = scalar_lea.sflag [#allocation4], %s279
          %s281 = sand.u32 %s76, 1
          %s282 = smul.addr %s281, 32
          %s283 = scalar_lea.vmem [#allocation7], %s282
          %284 = dma.done %s280, 512
        $region48: #{tpu_custom_call.1} parent=43 // pred_fallthru
          _
      $region44: #{tpu_custom_call.1} parent=5 // pred_fallthru
        _
    $region6: #{tpu_custom_call.1} parent=1 // loop_footer
      %s19 = sadd.s32 1, %s15
    $region7: #{tpu_custom_call.1} parent=1 // loop_footer_branch
      %14 = sbr.rel target = $region3
    $region8: #{tpu_custom_call.1} parent=1 // loop_exit
      _
    %285 = vsyncpa [#allocation3], 1
    %s286 = scalar_lea.sflag [#allocation3], 1
    %287 = vsyncpa %s286, 1
    %288 = vsyncpa [#allocation6], 1
    %s289 = scalar_lea.sflag [#allocation6], 1
    %290 = vsyncpa %s289, 1
    %291 = vsyncpa [#allocation4], 1
    %s292 = scalar_lea.sflag [#allocation4], 1
    %293 = vsyncpa %s292, 1

</llo_original>
